<compile_context>
chip_gen: v7x
topology: tpu7x:2x2x1
jax: 0.10.0
libtpu: 0.0.40
codegen_flags: <defaults>
</compile_context>

<pallas_src>
import jax
import jax.numpy as jnp
from jax.experimental import pallas as pl
from jax.experimental.pallas import tpu as pltpu


# ----------------------------------------------------------------------------
# Kernel
# ----------------------------------------------------------------------------
def _make_align_kernel(tk, resident_w):
    """Fused ALIGN matching head, K-tiled accumulator.

    Grid = (batch_tiles, k_tiles); K is the reduction ("arbitrary") axis.

    x_ref     : VMEM (tb, tk)            f32  -- flattened image block
    wv_ref    : VMEM (tk, D) / (Fpad, D) bf16 -- visual projection weight
    bv_ref    : VMEM (1, D)              f32  -- visual projection bias
    delta_ref : VMEM (1, D)              f32  -- (l2n(txt_tgt)-l2n(txt_base))/T
    out_ref   : VMEM (tb, 128)           f32  -- target prob, lane-dense slab
    acc_ref   : VMEM (tb, D)             f32  -- matmul accumulator scratch
    """

    def kernel(x_ref, wv_ref, bv_ref, delta_ref, out_ref, acc_ref):
        k = pl.program_id(1)

        @pl.when(k == 0)
        def _():
            acc_ref[...] = jnp.zeros_like(acc_ref)

        if resident_w:
            # whole weight lives in VMEM; slice the current K chunk
            off = pl.multiple_of(k * tk, 128)
            w_blk = wv_ref[pl.ds(off, tk), :]
        else:
            w_blk = wv_ref[...]

        # x arrives as f32 (cheapest HBM path); cast to bf16 on the VPU just
        # before the MXU dot (f32 accumulation on the MXU).
        x_blk = x_ref[...].astype(jnp.bfloat16)
        acc_ref[...] += jnp.dot(x_blk, w_blk,
                                preferred_element_type=jnp.float32)

        @pl.when(k == pl.num_programs(1) - 1)
        def _():
            # epilogue entirely in f32 (v5e VPU/EUP have no bf16 path)
            img = acc_ref[...] + bv_ref[...]                      # (tb, D)
            norm_sq = jnp.sum(img * img, axis=-1, keepdims=True)
            img_n = img * jax.lax.rsqrt(jnp.maximum(norm_sq, 1e-12))
            # 2-class softmax, class 0: softmax([l0, l1])[0] = sigmoid(l0 - l1)
            #   l0 - l1 = img_n . (txt0_n - txt1_n) / T = img_n . delta
            z = jnp.sum(img_n * delta_ref[...], axis=-1, keepdims=True)
            prob = 1.0 / (1.0 + jnp.exp(-z))
            out_ref[...] = jnp.broadcast_to(prob, out_ref.shape)  # lane-dense

    return kernel


# ----------------------------------------------------------------------------
# Tile selection helpers
# ----------------------------------------------------------------------------
def _choose_tk(f, tk_target):
    """K tile: multiple of 128, as large as possible, preferring a divisor of
    the (128-rounded) feature dim so the K pad is a no-op."""
    tk_target = max(128, (tk_target // 128) * 128)
    f128 = pl.cdiv(f, 128) * 128
    if f128 <= tk_target:
        return f128
    best = 128
    for cand in range(tk_target, 127, -128):
        if f128 % cand == 0:
            best = cand
            break
    if best < 1024 and tk_target >= 1024:
        # pathological divisor structure: accept a small K pad instead of a
        # tiny tile (per-step overhead would dominate otherwise)
        best = tk_target
    return best


def _choose_tb(b, tb_target):
    """Batch tile: multiple of 16, capped at tb_target (<=256 keeps the f32
    epilogue within vreg budget); split into >=2 tiles when possible so the
    'parallel' batch axis can shard across both v7x TensorCores."""
    tb_target = max(16, (tb_target // 16) * 16)
    b16 = pl.cdiv(b, 16) * 16
    tb = min(tb_target, b16)
    if b16 // tb < 2 and b16 >= 32:
        tb = max(16, ((b16 // 2) // 16) * 16)
    b_pad = pl.cdiv(b16, tb) * tb
    return tb, b_pad


def _vmem_need(tb, tk, f_pad, d, resident_w):
    x_buf = 2 * tb * tk * 4                                  # f32, double buf
    w_buf = (2 * f_pad * d * 2) if resident_w else (2 * tk * d * 2)
    acc = tb * d * 4
    consts = 2 * 2 * d * 4                                   # bias + delta
    out = 2 * tb * 128 * 4
    return x_buf + w_buf + acc + consts + out


def _vmem_budget():
    """Generation-aware VMEM ceiling with ~25% headroom for compiler scratch
    (128 MiB on v5e/v6e, 64 MiB on v7x)."""
    try:
        cap = int(pltpu.get_tpu_info().vmem_capacity_bytes)
    except Exception:
        cap = 64 * 1024 * 1024
    return int(cap * 0.75)


# ----------------------------------------------------------------------------
# One-time parameter preparation (mirrors the module's cached text processing)
# ----------------------------------------------------------------------------
def prepare_align_params(w_vis, b_vis, text_embeds, temperature, *,
                         tk_target=4096):
    """Done once at init: pad + pre-cast the static visual-projection weight
    to bf16, and fold the normalized [target, base] text embeddings, their
    transpose and 1/temperature into a single (1, D) delta vector."""
    f, d = w_vis.shape
    assert d % 128 == 0, "embedding dim must be lane-aligned (multiple of 128)"
    tk = _choose_tk(f, tk_target)
    f_pad = pl.cdiv(f, tk) * tk

    w_bf16 = w_vis.astype(jnp.bfloat16)
    if f_pad != f:
        w_bf16 = jnp.pad(w_bf16, ((0, f_pad - f), (0, 0)))
    bias = b_vis.astype(jnp.float32).reshape(1, d)

    txt = text_embeds.astype(jnp.float32)
    txt_n = txt * jax.lax.rsqrt(
        jnp.maximum(jnp.sum(txt * txt, axis=-1, keepdims=True), 1e-12))
    delta = ((txt_n[0] - txt_n[1]) / jnp.float32(temperature)).reshape(1, d)

    return dict(w_bf16=w_bf16, bias=bias, delta=delta,
                tk=tk, f=f, f_pad=f_pad, d=d)


# ----------------------------------------------------------------------------
# Forward
# ----------------------------------------------------------------------------
def align_matching_forward(img_input, params, *, tb_target=256,
                           force_resident=None):
    """img_input: (B, 3, H, W) float (NCHW, like the PyTorch module)."""
    b = img_input.shape[0]
    d, f, f_pad, tk = params["d"], params["f"], params["f_pad"], params["tk"]
    w_bf16, bias, delta = params["w_bf16"], params["bias"], params["delta"]

    x = img_input.astype(jnp.float32).reshape(b, -1)            # (B, F), free
    assert x.shape[1] == f

    tb, b_pad = _choose_tb(b, tb_target)
    if b_pad != b or f_pad != f:                # no-op copy avoided when aligned
        x = jnp.pad(x, ((0, b_pad - b), (0, f_pad - f)))

    n_b = b_pad // tb
    n_k = f_pad // tk

    vmem_budget = _vmem_budget()
    if force_resident is None:
        resident_w = _vmem_need(tb, tk, f_pad, d, True) <= vmem_budget
    else:
        resident_w = bool(force_resident)

    if resident_w:
        # whole weight pinned in VMEM, fetched once (constant block index)
        w_spec = pl.BlockSpec((f_pad, d), lambda i, k: (0, 0))
    else:
        # K-streamed weight (re-fetched once per batch tile)
        w_spec = pl.BlockSpec((tk, d), lambda i, k: (k, 0))

    w_copies = 1 if resident_w else n_b
    cost = pl.CostEstimate(
        flops=int(2 * b_pad * f_pad * d + 4 * b_pad * d),
        transcendentals=int(2 * b_pad),                  # rsqrt + exp per row
        bytes_accessed=int(b_pad * f_pad * 4             # x streamed as f32
                           + w_copies * f_pad * d * 2    # bf16 weight stream
                           + 2 * d * 4 * 2               # bias + delta
                           + b_pad * 128 * 4),           # output slab
    )

    out_padded = pl.pallas_call(
        _make_align_kernel(tk, resident_w),
        out_shape=jax.ShapeDtypeStruct((b_pad, 128), jnp.float32),
        grid_spec=pltpu.PrefetchScalarGridSpec(
            num_scalar_prefetch=0,
            grid=(n_b, n_k),
            in_specs=[
                pl.BlockSpec((tb, tk), lambda i, k: (i, k)),   # x block
                w_spec,                                        # weight
                pl.BlockSpec((1, d), lambda i, k: (0, 0)),     # bias
                pl.BlockSpec((1, d), lambda i, k: (0, 0)),     # delta
            ],
            out_specs=pl.BlockSpec((tb, 128), lambda i, k: (i, 0)),
            scratch_shapes=[pltpu.VMEM((tb, d), jnp.float32)],
        ),
        compiler_params=pltpu.CompilerParams(
            dimension_semantics=("parallel", "arbitrary"),
            vmem_limit_bytes=vmem_budget,
        ),
        cost_estimate=cost,
    )(x, w_bf16, bias, delta)

    return out_padded[:b, 0:1]


# ----------------------------------------------------------------------------
# Pure-JAX reference (original module math) for sanity checking
# ----------------------------------------------------------------------------
def reference_forward(img_input, w_vis, b_vis, text_embeds, temperature):
    b = img_input.shape[0]
    x = img_input.astype(jnp.float32).reshape(b, -1)
    img = x @ w_vis + b_vis
    img_n = img / jnp.linalg.norm(img, axis=-1, keepdims=True)
    txt_n = text_embeds / jnp.linalg.norm(text_embeds, axis=-1, keepdims=True)
    logits = img_n @ txt_n.T / temperature
    probs = jax.nn.softmax(logits, axis=1)
    return probs[:, 0:1]


if __name__ == "__main__":
    # small shapes consistent with the module's forward: batch of RGB images
    B, C, H, W = 2, 3, 16, 16
    F = C * H * W            # flattened image features (768, lane-aligned)
    D = 128                  # joint embedding dim (lane-aligned)

    key = jax.random.PRNGKey(0)
    k_img, k_w, k_b, k_txt = jax.random.split(key, 4)

    img_input = jax.random.normal(k_img, (B, C, H, W), dtype=jnp.float32)
    w_vis = jax.random.normal(k_w, (F, D), dtype=jnp.float32) * 0.02
    b_vis = jax.random.normal(k_b, (D,), dtype=jnp.float32) * 0.02
    # TODO(synk): the real EfficientNet image tower + BERT text tower /
    # AlignProcessor tokenization (process_text) and bicubic-resize preprocess
    # have no clean Pallas equivalent; replaced with a single synthetic visual
    # projection and deterministic [target, base] text embeddings.
    text_embeds = jax.random.normal(k_txt, (2, D), dtype=jnp.float32)
    temperature = 0.05       # ALIGN-style learned temperature (synthetic)

    # one-time parameter prep (pre-padded / pre-cast weights, folded text side)
    params = prepare_align_params(w_vis, b_vis, text_embeds, temperature)

    # default path: auto tiles, weight resident in VMEM (fits easily here)
    probs = align_matching_forward(img_input, params)
    probs = jax.block_until_ready(probs)

    # also exercise the K-streamed multi-tile path
    params_s = prepare_align_params(w_vis, b_vis, text_embeds, temperature,
                                    tk_target=256)
    probs_s = align_matching_forward(img_input, params_s, tb_target=16,
                                     force_resident=False)
    probs_s = jax.block_until_ready(probs_s)

    # f32 reference (kernel casts to bf16 for the MXU -> loose tolerance)
    ref = reference_forward(img_input, w_vis, b_vis, text_embeds, temperature)
    assert probs.shape == (B, 1)
    assert probs_s.shape == (B, 1)
    assert jnp.allclose(probs, ref, atol=2e-2, rtol=2e-2)
    assert jnp.allclose(probs_s, ref, atol=2e-2, rtol=2e-2)

    # tighter check against a reference using the same bf16 rounding
    x_q = img_input.astype(jnp.bfloat16).astype(jnp.float32)
    w_q = w_vis.astype(jnp.bfloat16).astype(jnp.float32)
    ref_q = reference_forward(x_q, w_q, b_vis, text_embeds, temperature)
    assert jnp.allclose(probs, ref_q, atol=1e-3, rtol=1e-3)
    assert jnp.allclose(probs_s, ref_q, atol=1e-3, rtol=1e-3)

    print("KERNEL_OK")
</pallas_src>

<mosaic_0001>
module attributes {stable_mosaic.version = 11 : i64} {
  func.func @kernel(%arg0: i32, %arg1: i32, %arg2: memref<16x768xf32, #tpu.memory_space<vmem>>, %arg3: memref<768x128xbf16, #tpu.memory_space<vmem>>, %arg4: memref<1x128xf32, #tpu.memory_space<vmem>>, %arg5: memref<1x128xf32, #tpu.memory_space<vmem>>, %arg6: memref<16x128xf32, #tpu.memory_space<vmem>>, %arg7: memref<16x128xf32, #tpu.memory_space<vmem>>) attributes {dimension_semantics = [#tpu.dimension_semantics<parallel>, #tpu.dimension_semantics<arbitrary>], iteration_bounds = array<i64: 1, 1>, scalar_prefetch = 0 : i64, scratch_operands = 1 : i64, tpu.core_type = #tpu.core_type<tc>, window_params = [{transform_indices = @transform_0, window_bounds = array<i64: 16, 768>}, {pipeline_mode = #tpu.pipeline_mode<synchronous>, transform_indices = @transform_1, window_bounds = array<i64: 768, 128>}, {pipeline_mode = #tpu.pipeline_mode<synchronous>, transform_indices = @transform_2, window_bounds = array<i64: 1, 128>}, {pipeline_mode = #tpu.pipeline_mode<synchronous>, transform_indices = @transform_3, window_bounds = array<i64: 1, 128>}, {transform_indices = @transform_4, window_bounds = array<i64: 16, 128>}]} {
    %c0_i32 = arith.constant 0 : i32
    %0 = arith.cmpi eq, %arg1, %c0_i32 : i32
    %1 = arith.extui %0 : i1 to i32
    %c0_i32_0 = arith.constant 0 : i32
    %2 = arith.cmpi ne, %1, %c0_i32_0 : i32
    scf.if %2 {
      %cst_9 = arith.constant 0.000000e+00 : f32
      %16 = vector.broadcast %cst_9 : f32 to vector<16x128xf32>
      %c0_10 = arith.constant 0 : index
      %c0_11 = arith.constant 0 : index
      %17 = vector.load %arg7[%c0_10, %c0_11] : memref<16x128xf32, #tpu.memory_space<vmem>>, vector<16x128xf32>
      tpu.vector_store %arg7[%c0_10, %c0_11], %16 {strides = array<i32>} : memref<16x128xf32, #tpu.memory_space<vmem>>, vector<16x128xf32>,
    } else {
    }
    %c768_i32 = arith.constant 768 : i32
    %3 = arith.muli %arg1, %c768_i32 : i32
    %4 = tpu.assume_multiple %3, 128 : i32
    %5 = arith.index_cast %4 : i32 to index
    %c0 = arith.constant 0 : index
    %6 = vector.load %arg3[%5, %c0] : memref<768x128xbf16, #tpu.memory_space<vmem>>, vector<768x128xbf16>
    %c0_1 = arith.constant 0 : index
    %c0_2 = arith.constant 0 : index
    %7 = vector.load %arg2[%c0_1, %c0_2] : memref<16x768xf32, #tpu.memory_space<vmem>>, vector<16x768xf32>
    %8 = arith.truncf %7 : vector<16x768xf32> to vector<16x768xbf16>
    %c0_3 = arith.constant 0 : index
    %c0_4 = arith.constant 0 : index
    %9 = vector.load %arg7[%c0_3, %c0_4] : memref<16x128xf32, #tpu.memory_space<vmem>>, vector<16x128xf32>
    %cst = arith.constant dense<0.000000e+00> : vector<16x128xf32>
    %10 = tpu.matmul %8, %6, %cst {dimension_numbers = #tpu.dot_dimension_numbers<[1], [0], [0], [1], [0, 0, 1, 1], [], []>} : vector<16x768xbf16>, vector<768x128xbf16>, vector<16x128xf32> -> vector<16x128xf32>
    %11 = arith.addf %9, %10 : vector<16x128xf32>
    %c0_5 = arith.constant 0 : index
    %c0_6 = arith.constant 0 : index
    %12 = vector.load %arg7[%c0_5, %c0_6] : memref<16x128xf32, #tpu.memory_space<vmem>>, vector<16x128xf32>
    tpu.vector_store %arg7[%c0_5, %c0_6], %11 {strides = array<i32>} : memref<16x128xf32, #tpu.memory_space<vmem>>, vector<16x128xf32>,
    %c0_i32_7 = arith.constant 0 : i32
    %13 = arith.cmpi eq, %arg1, %c0_i32_7 : i32
    %14 = arith.extui %13 : i1 to i32
    %c0_i32_8 = arith.constant 0 : i32
    %15 = arith.cmpi ne, %14, %c0_i32_8 : i32
    scf.if %15 {
      %c0_9 = arith.constant 0 : index
      %c0_10 = arith.constant 0 : index
      %16 = vector.load %arg7[%c0_9, %c0_10] : memref<16x128xf32, #tpu.memory_space<vmem>>, vector<16x128xf32>
      %c0_11 = arith.constant 0 : index
      %c0_12 = arith.constant 0 : index
      %17 = vector.load %arg4[%c0_11, %c0_12] : memref<1x128xf32, #tpu.memory_space<vmem>>, vector<1x128xf32>
      %18 = vector.broadcast %17 : vector<1x128xf32> to vector<16x128xf32>
      %19 = arith.addf %16, %18 : vector<16x128xf32>
      %20 = arith.mulf %19, %19 : vector<16x128xf32>
      %cst_13 = arith.constant dense<0.000000e+00> : vector<16xf32>
      %21 = vector.multi_reduction <add>, %20, %cst_13 [1] : vector<16x128xf32> to vector<16xf32>
      %22 = vector.shape_cast %21 : vector<16xf32> to vector<16x1xf32>
      %cst_14 = arith.constant 9.99999996E-13 : f32
      %23 = vector.broadcast %cst_14 : f32 to vector<16x1xf32>
      %24 = arith.maximumf %22, %23 : vector<16x1xf32>
      %25 = math.rsqrt %24 : vector<16x1xf32>
      %26 = vector.broadcast %25 : vector<16x1xf32> to vector<16x128xf32>
      %27 = arith.mulf %19, %26 : vector<16x128xf32>
      %c0_15 = arith.constant 0 : index
      %c0_16 = arith.constant 0 : index
      %28 = vector.load %arg5[%c0_15, %c0_16] : memref<1x128xf32, #tpu.memory_space<vmem>>, vector<1x128xf32>
      %29 = vector.broadcast %28 : vector<1x128xf32> to vector<16x128xf32>
      %30 = arith.mulf %27, %29 : vector<16x128xf32>
      %cst_17 = arith.constant dense<0.000000e+00> : vector<16xf32>
      %31 = vector.multi_reduction <add>, %30, %cst_17 [1] : vector<16x128xf32> to vector<16xf32>
      %32 = vector.shape_cast %31 : vector<16xf32> to vector<16x1xf32>
      %cst_18 = arith.constant 0.000000e+00 : f32
      %33 = vector.broadcast %cst_18 : f32 to vector<16x1xf32>
      %34 = arith.subf %33, %32 : vector<16x1xf32>
      %35 = math.exp %34 : vector<16x1xf32>
      %cst_19 = arith.constant 1.000000e+00 : f32
      %36 = vector.broadcast %cst_19 : f32 to vector<16x1xf32>
      %37 = arith.addf %36, %35 : vector<16x1xf32>
      %cst_20 = arith.constant 1.000000e+00 : f32
      %38 = vector.broadcast %cst_20 : f32 to vector<16x1xf32>
      %39 = arith.divf %38, %37 : vector<16x1xf32>
      %40 = vector.shape_cast %39 : vector<16x1xf32> to vector<16x1xf32>
      %41 = vector.broadcast %40 : vector<16x1xf32> to vector<16x128xf32>
      %c0_21 = arith.constant 0 : index
      %c0_22 = arith.constant 0 : index
      %42 = vector.load %arg6[%c0_21, %c0_22] : memref<16x128xf32, #tpu.memory_space<vmem>>, vector<16x128xf32>
      tpu.vector_store %arg6[%c0_21, %c0_22], %41 {strides = array<i32>} : memref<16x128xf32, #tpu.memory_space<vmem>>, vector<16x128xf32>,
    } else {
    }
    return
  }
  func.func @transform_0(%arg0: i32, %arg1: i32) -> (i32, i32) {
    %c0_i32 = arith.constant 0 : i32
    return %arg0, %arg1 : i32, i32
  }
  func.func @transform_1(%arg0: i32, %arg1: i32) -> (i32, i32) {
    %c0_i32 = arith.constant 0 : i32
    %c0_i32_0 = arith.constant 0 : i32
    %c0_i32_1 = arith.constant 0 : i32
    return %c0_i32, %c0_i32_0 : i32, i32
  }
  func.func @transform_2(%arg0: i32, %arg1: i32) -> (i32, i32) {
    %c0_i32 = arith.constant 0 : i32
    %c0_i32_0 = arith.constant 0 : i32
    %c0_i32_1 = arith.constant 0 : i32
    return %c0_i32, %c0_i32_0 : i32, i32
  }
  func.func @transform_3(%arg0: i32, %arg1: i32) -> (i32, i32) {
    %c0_i32 = arith.constant 0 : i32
    %c0_i32_0 = arith.constant 0 : i32
    %c0_i32_1 = arith.constant 0 : i32
    return %c0_i32, %c0_i32_0 : i32, i32
  }
  func.func @transform_4(%arg0: i32, %arg1: i32) -> (i32, i32) {
    %c0_i32 = arith.constant 0 : i32
    %c0_i32_0 = arith.constant 0 : i32
    return %arg0, %c0_i32 : i32, i32
  }
}

</mosaic_0001>

<llo_original>
// kernel: tpu_custom_call.1
$region0: #{tpu_custom_call.1}
  #allocation0 [shape = 'u32[]', space=smem, size = 0x4, offset = 0x4, fixed_abs, tag = 'smem constant byte address 0x4 - core index']
  #allocation1 [shape = 'u32[144,128]{1,0:T(1,128)}', space=vmem, size = 0x12000, scoped, tag = 'internal scratch']
  #allocation2 [shape = 'f32[16,128]{1,0:T(8,128)}', space=vmem, size = 0x2000, scoped, tag = 'scratch operand']
  %s0 = inlined_call_operand.hbm [shape: f32[16,768], index: 0, kind: input, shape index: {}]
  %s1 = inlined_call_operand.hbm [shape: bf16[768,128], index: 1, kind: input, shape index: {}]
  %s2 = inlined_call_operand.vmem [shape: f32[1,128], index: 2, kind: input, shape index: {}]
  %s3 = inlined_call_operand.vmem [shape: f32[1,128], index: 3, kind: input, shape index: {}]
  %s4 = inlined_call_operand.hbm [shape: f32[16,128], index: 4, kind: output, shape index: {}]
  %s5 = sld [smem:[#allocation0]]
  $region42: #{tpu_custom_call.1} parent=0
    _
  %s7 = ssub.s32 1, %s5
  %s8 = scalar_select 0, %s7, %s5
  $region1: #{tpu_custom_call.1} parent=0
    #allocation3 [shape = 'u8[49152]{0}', space=vmem, size = 0xc000, scoped, tag = 'input window, operand 0, single buffered']
    #allocation4 [shape = 's32[1]{0}', space=sflag, size = 0x4, scoped, tag = 'scoped memory for tpu_custom_call.1']
    #allocation5 [shape = 's32[1]{0}', space=sflag, size = 0x4, scoped, tag = 'scoped memory for tpu_custom_call.1']
    #allocation6 [shape = 'u8[196608]{0}', space=vmem, size = 0x30000, scoped, tag = 'input window, operand 1, single buffered']
    #allocation7 [shape = 's32[1]{0}', space=sflag, size = 0x4, scoped, tag = 'scoped memory for tpu_custom_call.1']
    #allocation8 [shape = 'u8[8192]{0}', space=vmem, size = 0x2000, scoped, tag = 'output window, operand 0, single buffered']
    %9 = vsyncpa [#allocation4], 0
    %10 = vsyncpa [#allocation7], 0
    %11 = vsyncpa [#allocation5], 0
    // Predicated region
    $region2: #{tpu_custom_call.1} parent=1 // pred_check
      _
    $region3: #{tpu_custom_call.1} parent=1 // pred_check_branch
      %13 = sbr.rel (0) target = $region5
    $region4: #{tpu_custom_call.1} parent=1 // pred_region
      %s15 = ssub.s32 1536, 1536
      %16 = vsyncadd [#allocation4], %s15
      %s17 = sshll.u32 [#allocation3], 4
      %s18 = int_to_ptr.vmem [resolvable:$true] %s17
      %23 = dma.hbm_to_vmem [thread:$0]  %s0, 1536, %s18, [#allocation4], 768, 768, 48
    $region5: #{tpu_custom_call.1} parent=1 // pred_fallthru
      _
    // Predicated region
    $region6: #{tpu_custom_call.1} parent=1 // pred_check
      _
    $region7: #{tpu_custom_call.1} parent=1 // pred_check_branch
      %25 = sbr.rel (0) target = $region9
    $region8: #{tpu_custom_call.1} parent=1 // pred_region
      %s27 = ssub.s32 6144, 6144
      %28 = vsyncadd [#allocation7], %s27
      %s29 = sshll.u32 [#allocation6], 4
      %s30 = int_to_ptr.vmem [resolvable:$true] %s29
      %35 = dma.hbm_to_vmem [thread:$0]  %s1, 6144, %s30, [#allocation7], 64, 64, 4
    $region9: #{tpu_custom_call.1} parent=1 // pred_fallthru
      _
    // Predicated region
    $region10: #{tpu_custom_call.1} parent=1 // pred_check
      _
    $region11: #{tpu_custom_call.1} parent=1 // pred_check_branch
      %37 = sbr.rel (0) target = $region13
    $region12: #{tpu_custom_call.1} parent=1 // pred_region
      _
    $region13: #{tpu_custom_call.1} parent=1 // pred_fallthru
      _
    // Predicated region
    $region14: #{tpu_custom_call.1} parent=1 // pred_check
      _
    $region15: #{tpu_custom_call.1} parent=1 // pred_check_branch
      %39 = sbr.rel (0) target = $region17
    $region16: #{tpu_custom_call.1} parent=1 // pred_region
      _
    $region17: #{tpu_custom_call.1} parent=1 // pred_fallthru
      _
    // Predicated region
    $region18: #{tpu_custom_call.1} parent=1 // pred_check
      _
    $region19: #{tpu_custom_call.1} parent=1 // pred_check_branch
      %41 = sbr.rel (0) target = $region21
    $region20: #{tpu_custom_call.1} parent=1 // pred_region
      %42 = dma.done [#allocation4], 1536
    $region21: #{tpu_custom_call.1} parent=1 // pred_fallthru
      _
    // Predicated region
    $region22: #{tpu_custom_call.1} parent=1 // pred_check
      _
    $region23: #{tpu_custom_call.1} parent=1 // pred_check_branch
      %44 = sbr.rel (0) target = $region25
    $region24: #{tpu_custom_call.1} parent=1 // pred_region
      %45 = dma.done [#allocation7], 6144
    $region25: #{tpu_custom_call.1} parent=1 // pred_fallthru
      _
    %p47 = scmp.eq.s32.totalorder 0, 0
    // Predicated region
    $region26: #{tpu_custom_call.1} parent=1 // pred_check
      %p48 = pneg %p47
    $region27: #{tpu_custom_call.1} parent=1 // pred_check_branch
      %50 = sbr.rel (%p48) target = $region29
    $region28: #{tpu_custom_call.1} parent=1 // pred_region
      %51 = vst [vmem:[#allocation2] sm:$0xff] 0.0
      %52 = vst [vmem:[#allocation2 + $0x8] sm:$0xff] 0.0
    $region29: #{tpu_custom_call.1} parent=1 // pred_fallthru
      _
    %s53 = smul.u32 0, 768
    %s54 = sshra.s32 %s53, 3
    %s55 = sand.u32 %s53, 7
    %s56 = smul.addr %s54, 4
    %s57 = scalar_lea.vmem [#allocation6], %s56
    %v58 = vld [vmem:[%s57] sm:$0xf]
    %v59 = vld [vmem:[%s57 + $0x4] sm:$0xf]
    %v60 = vld [vmem:[%s57 + $0x8] sm:$0xf]
    %v61 = vld [vmem:[%s57 + $0xc] sm:$0xf]
    %v62 = vld [vmem:[%s57 + $0x10] sm:$0xf]
    %v63 = vld [vmem:[%s57 + $0x14] sm:$0xf]
    %v64 = vld [vmem:[%s57 + $0x18] sm:$0xf]
    %v65 = vld [vmem:[%s57 + $0x1c] sm:$0xf]
    %v66 = vld [vmem:[%s57 + $0x20] sm:$0xf]
    %v67 = vld [vmem:[%s57 + $0x24] sm:$0xf]
    %v68 = vld [vmem:[%s57 + $0x28] sm:$0xf]
    %v69 = vld [vmem:[%s57 + $0x2c] sm:$0xf]
    %v70 = vld [vmem:[%s57 + $0x30] sm:$0xf]
    %v71 = vld [vmem:[%s57 + $0x34] sm:$0xf]
    %v72 = vld [vmem:[%s57 + $0x38] sm:$0xf]
    %v73 = vld [vmem:[%s57 + $0x3c] sm:$0xf]
    %v74 = vld [vmem:[%s57 + $0x40] sm:$0xf]
    %v75 = vld [vmem:[%s57 + $0x44] sm:$0xf]
    %v76 = vld [vmem:[%s57 + $0x48] sm:$0xf]
    %v77 = vld [vmem:[%s57 + $0x4c] sm:$0xf]
    %v78 = vld [vmem:[%s57 + $0x50] sm:$0xf]
    %v79 = vld [vmem:[%s57 + $0x54] sm:$0xf]
    %v80 = vld [vmem:[%s57 + $0x58] sm:$0xf]
    %v81 = vld [vmem:[%s57 + $0x5c] sm:$0xf]
    %v82 = vld [vmem:[%s57 + $0x60] sm:$0xf]
    %v83 = vld [vmem:[%s57 + $0x64] sm:$0xf]
    %v84 = vld [vmem:[%s57 + $0x68] sm:$0xf]
    %v85 = vld [vmem:[%s57 + $0x6c] sm:$0xf]
    %v86 = vld [vmem:[%s57 + $0x70] sm:$0xf]
    %v87 = vld [vmem:[%s57 + $0x74] sm:$0xf]
    %v88 = vld [vmem:[%s57 + $0x78] sm:$0xf]
    %v89 = vld [vmem:[%s57 + $0x7c] sm:$0xf]
    %v90 = vld [vmem:[%s57 + $0x80] sm:$0xf]
    %v91 = vld [vmem:[%s57 + $0x84] sm:$0xf]
    %v92 = vld [vmem:[%s57 + $0x88] sm:$0xf]
    %v93 = vld [vmem:[%s57 + $0x8c] sm:$0xf]
    %v94 = vld [vmem:[%s57 + $0x90] sm:$0xf]
    %v95 = vld [vmem:[%s57 + $0x94] sm:$0xf]
    %v96 = vld [vmem:[%s57 + $0x98] sm:$0xf]
    %v97 = vld [vmem:[%s57 + $0x9c] sm:$0xf]
    %v98 = vld [vmem:[%s57 + $0xa0] sm:$0xf]
    %v99 = vld [vmem:[%s57 + $0xa4] sm:$0xf]
    %v100 = vld [vmem:[%s57 + $0xa8] sm:$0xf]
    %v101 = vld [vmem:[%s57 + $0xac] sm:$0xf]
    %v102 = vld [vmem:[%s57 + $0xb0] sm:$0xf]
    %v103 = vld [vmem:[%s57 + $0xb4] sm:$0xf]
    %v104 = vld [vmem:[%s57 + $0xb8] sm:$0xf]
    %v105 = vld [vmem:[%s57 + $0xbc] sm:$0xf]
    %v106 = vld [vmem:[%s57 + $0xc0] sm:$0xf]
    %v107 = vld [vmem:[%s57 + $0xc4] sm:$0xf]
    %v108 = vld [vmem:[%s57 + $0xc8] sm:$0xf]
    %v109 = vld [vmem:[%s57 + $0xcc] sm:$0xf]
    %v110 = vld [vmem:[%s57 + $0xd0] sm:$0xf]
    %v111 = vld [vmem:[%s57 + $0xd4] sm:$0xf]
    %v112 = vld [vmem:[%s57 + $0xd8] sm:$0xf]
    %v113 = vld [vmem:[%s57 + $0xdc] sm:$0xf]
    %v114 = vld [vmem:[%s57 + $0xe0] sm:$0xf]
    %v115 = vld [vmem:[%s57 + $0xe4] sm:$0xf]
    %v116 = vld [vmem:[%s57 + $0xe8] sm:$0xf]
    %v117 = vld [vmem:[%s57 + $0xec] sm:$0xf]
    %v118 = vld [vmem:[%s57 + $0xf0] sm:$0xf]
    %v119 = vld [vmem:[%s57 + $0xf4] sm:$0xf]
    %v120 = vld [vmem:[%s57 + $0xf8] sm:$0xf]
    %v121 = vld [vmem:[%s57 + $0xfc] sm:$0xf]
    %v122 = vld [vmem:[%s57 + $0x100] sm:$0xf]
    %v123 = vld [vmem:[%s57 + $0x104] sm:$0xf]
    %v124 = vld [vmem:[%s57 + $0x108] sm:$0xf]
    %v125 = vld [vmem:[%s57 + $0x10c] sm:$0xf]
    %v126 = vld [vmem:[%s57 + $0x110] sm:$0xf]
    %v127 = vld [vmem:[%s57 + $0x114] sm:$0xf]
    %v128 = vld [vmem:[%s57 + $0x118] sm:$0xf]
    %v129 = vld [vmem:[%s57 + $0x11c] sm:$0xf]
    %v130 = vld [vmem:[%s57 + $0x120] sm:$0xf]
    %v131 = vld [vmem:[%s57 + $0x124] sm:$0xf]
    %v132 = vld [vmem:[%s57 + $0x128] sm:$0xf]
    %v133 = vld [vmem:[%s57 + $0x12c] sm:$0xf]
    %v134 = vld [vmem:[%s57 + $0x130] sm:$0xf]
    %v135 = vld [vmem:[%s57 + $0x134] sm:$0xf]
    %v136 = vld [vmem:[%s57 + $0x138] sm:$0xf]
    %v137 = vld [vmem:[%s57 + $0x13c] sm:$0xf]
    %v138 = vld [vmem:[%s57 + $0x140] sm:$0xf]
    %v139 = vld [vmem:[%s57 + $0x144] sm:$0xf]
    %v140 = vld [vmem:[%s57 + $0x148] sm:$0xf]
    %v141 = vld [vmem:[%s57 + $0x14c] sm:$0xf]
    %v142 = vld [vmem:[%s57 + $0x150] sm:$0xf]
    %v143 = vld [vmem:[%s57 + $0x154] sm:$0xf]
    %v144 = vld [vmem:[%s57 + $0x158] sm:$0xf]
    %v145 = vld [vmem:[%s57 + $0x15c] sm:$0xf]
    %v146 = vld [vmem:[%s57 + $0x160] sm:$0xf]
    %v147 = vld [vmem:[%s57 + $0x164] sm:$0xf]
    %v148 = vld [vmem:[%s57 + $0x168] sm:$0xf]
    %v149 = vld [vmem:[%s57 + $0x16c] sm:$0xf]
    %v150 = vld [vmem:[%s57 + $0x170] sm:$0xf]
    %v151 = vld [vmem:[%s57 + $0x174] sm:$0xf]
    %v152 = vld [vmem:[%s57 + $0x178] sm:$0xf]
    %v153 = vld [vmem:[%s57 + $0x17c] sm:$0xf]
    %v154 = vld [vmem:[#allocation3] sm:$0xff]
    %v155 = vld [vmem:[#allocation3 + $0x8] sm:$0xff]
    %v156 = vld [vmem:[#allocation3 + $0x10] sm:$0xff]
    %v157 = vld [vmem:[#allocation3 + $0x18] sm:$0xff]
    %v158 = vld [vmem:[#allocation3 + $0x20] sm:$0xff]
    %v159 = vld [vmem:[#allocation3 + $0x28] sm:$0xff]
    %v160 = vld [vmem:[#allocation3 + $0x30] sm:$0xff]
    %v161 = vld [vmem:[#allocation3 + $0x38] sm:$0xff]
    %v162 = vld [vmem:[#allocation3 + $0x40] sm:$0xff]
    %v163 = vld [vmem:[#allocation3 + $0x48] sm:$0xff]
    %v164 = vld [vmem:[#allocation3 + $0x50] sm:$0xff]
    %v165 = vld [vmem:[#allocation3 + $0x58] sm:$0xff]
    %v166 = vpack.c.bf16 %v160, %v154
    %v167 = vpack.c.bf16 %v161, %v155
    %v168 = vpack.c.bf16 %v162, %v156
    %v169 = vpack.c.bf16 %v163, %v157
    %v170 = vpack.c.bf16 %v164, %v158
    %v171 = vpack.c.bf16 %v165, %v159
    %v172 = vld [vmem:[#allocation2] sm:$0xff]
    %v173 = vld [vmem:[#allocation2 + $0x8] sm:$0xff]
    %v270 = vunpack.c.l.b16 %v58
    %v271 = vunpack.c.l.b16 %v59
    %v272 = vunpack.c.l.b16 %v60
    %v273 = vunpack.c.l.b16 %v61
    %v274 = vunpack.c.l.b16 %v62
    %v275 = vunpack.c.l.b16 %v63
    %v276 = vunpack.c.l.b16 %v64
    %v277 = vunpack.c.l.b16 %v65
    %v278 = vunpack.c.l.b16 %v66
    %v279 = vunpack.c.l.b16 %v67
    %v280 = vunpack.c.l.b16 %v68
    %v281 = vunpack.c.l.b16 %v69
    %v282 = vunpack.c.l.b16 %v70
    %v283 = vunpack.c.l.b16 %v71
    %v284 = vunpack.c.l.b16 %v72
    %v285 = vunpack.c.l.b16 %v73
    %v286 = vunpack.c.l.b16 %v74
    %v287 = vunpack.c.l.b16 %v75
    %v288 = vunpack.c.l.b16 %v76
    %v289 = vunpack.c.l.b16 %v77
    %v290 = vunpack.c.l.b16 %v78
    %v291 = vunpack.c.l.b16 %v79
    %v292 = vunpack.c.l.b16 %v80
    %v293 = vunpack.c.l.b16 %v81
    %v294 = vunpack.c.l.b16 %v82
    %v295 = vunpack.c.l.b16 %v83
    %v296 = vunpack.c.l.b16 %v84
    %v297 = vunpack.c.l.b16 %v85
    %v298 = vunpack.c.l.b16 %v86
    %v299 = vunpack.c.l.b16 %v87
    %v300 = vunpack.c.l.b16 %v88
    %v301 = vunpack.c.l.b16 %v89
    %v302 = vunpack.c.l.b16 %v90
    %v303 = vunpack.c.l.b16 %v91
    %v304 = vunpack.c.l.b16 %v92
    %v305 = vunpack.c.l.b16 %v93
    %v306 = vunpack.c.l.b16 %v94
    %v307 = vunpack.c.l.b16 %v95
    %v308 = vunpack.c.l.b16 %v96
    %v309 = vunpack.c.l.b16 %v97
    %v310 = vunpack.c.l.b16 %v98
    %v311 = vunpack.c.l.b16 %v99
    %v312 = vunpack.c.l.b16 %v100
    %v313 = vunpack.c.l.b16 %v101
    %v314 = vunpack.c.l.b16 %v102
    %v315 = vunpack.c.l.b16 %v103
    %v316 = vunpack.c.l.b16 %v104
    %v317 = vunpack.c.l.b16 %v105
    %v318 = vunpack.c.l.b16 %v106
    %v319 = vunpack.c.l.b16 %v107
    %v320 = vunpack.c.l.b16 %v108
    %v321 = vunpack.c.l.b16 %v109
    %v322 = vunpack.c.l.b16 %v110
    %v323 = vunpack.c.l.b16 %v111
    %v324 = vunpack.c.l.b16 %v112
    %v325 = vunpack.c.l.b16 %v113
    %v326 = vunpack.c.l.b16 %v114
    %v327 = vunpack.c.l.b16 %v115
    %v328 = vunpack.c.l.b16 %v116
    %v329 = vunpack.c.l.b16 %v117
    %v330 = vunpack.c.l.b16 %v118
    %v331 = vunpack.c.l.b16 %v119
    %v332 = vunpack.c.l.b16 %v120
    %v333 = vunpack.c.l.b16 %v121
    %v334 = vunpack.c.l.b16 %v122
    %v335 = vunpack.c.l.b16 %v123
    %v336 = vunpack.c.l.b16 %v124
    %v337 = vunpack.c.l.b16 %v125
    %v338 = vunpack.c.l.b16 %v126
    %v339 = vunpack.c.l.b16 %v127
    %v340 = vunpack.c.l.b16 %v128
    %v341 = vunpack.c.l.b16 %v129
    %v342 = vunpack.c.l.b16 %v130
    %v343 = vunpack.c.l.b16 %v131
    %v344 = vunpack.c.l.b16 %v132
    %v345 = vunpack.c.l.b16 %v133
    %v346 = vunpack.c.l.b16 %v134
    %v347 = vunpack.c.l.b16 %v135
    %v348 = vunpack.c.l.b16 %v136
    %v349 = vunpack.c.l.b16 %v137
    %v350 = vunpack.c.l.b16 %v138
    %v351 = vunpack.c.l.b16 %v139
    %v352 = vunpack.c.l.b16 %v140
    %v353 = vunpack.c.l.b16 %v141
    %v354 = vunpack.c.l.b16 %v142
    %v355 = vunpack.c.l.b16 %v143
    %v356 = vunpack.c.l.b16 %v144
    %v357 = vunpack.c.l.b16 %v145
    %v358 = vunpack.c.l.b16 %v146
    %v359 = vunpack.c.l.b16 %v147
    %v360 = vunpack.c.l.b16 %v148
    %v361 = vunpack.c.l.b16 %v149
    %v362 = vunpack.c.l.b16 %v150
    %v363 = vunpack.c.l.b16 %v151
    %v364 = vunpack.c.l.b16 %v152
    %v365 = vunpack.c.l.b16 %v153
    %v366 = vpack.c.b16 %v271, %v270
    %v367 = vpack.c.b16 %v273, %v272
    %v368 = vpack.c.b16 %v275, %v274
    %v369 = vpack.c.b16 %v277, %v276
    %v370 = vpack.c.b16 %v279, %v278
    %v371 = vpack.c.b16 %v281, %v280
    %v372 = vpack.c.b16 %v283, %v282
    %v373 = vpack.c.b16 %v285, %v284
    %v374 = vpack.c.b16 %v287, %v286
    %v375 = vpack.c.b16 %v289, %v288
    %v376 = vpack.c.b16 %v291, %v290
    %v377 = vpack.c.b16 %v293, %v292
    %v378 = vpack.c.b16 %v295, %v294
    %v379 = vpack.c.b16 %v297, %v296
    %v380 = vpack.c.b16 %v299, %v298
    %v381 = vpack.c.b16 %v301, %v300
    %v382 = vpack.c.b16 %v303, %v302
    %v383 = vpack.c.b16 %v305, %v304
    %v384 = vpack.c.b16 %v307, %v306
    %v385 = vpack.c.b16 %v309, %v308
    %v386 = vpack.c.b16 %v311, %v310
    %v387 = vpack.c.b16 %v313, %v312
    %v388 = vpack.c.b16 %v315, %v314
    %v389 = vpack.c.b16 %v317, %v316
    %v390 = vpack.c.b16 %v319, %v318
    %v391 = vpack.c.b16 %v321, %v320
    %v392 = vpack.c.b16 %v323, %v322
    %v393 = vpack.c.b16 %v325, %v324
    %v394 = vpack.c.b16 %v327, %v326
    %v395 = vpack.c.b16 %v329, %v328
    %v396 = vpack.c.b16 %v331, %v330
    %v397 = vpack.c.b16 %v333, %v332
    %v398 = vpack.c.b16 %v335, %v334
    %v399 = vpack.c.b16 %v337, %v336
    %v400 = vpack.c.b16 %v339, %v338
    %v401 = vpack.c.b16 %v341, %v340
    %v402 = vpack.c.b16 %v343, %v342
    %v403 = vpack.c.b16 %v345, %v344
    %v404 = vpack.c.b16 %v347, %v346
    %v405 = vpack.c.b16 %v349, %v348
    %v406 = vpack.c.b16 %v351, %v350
    %v407 = vpack.c.b16 %v353, %v352
    %v408 = vpack.c.b16 %v355, %v354
    %v409 = vpack.c.b16 %v357, %v356
    %v410 = vpack.c.b16 %v359, %v358
    %v411 = vpack.c.b16 %v361, %v360
    %v412 = vpack.c.b16 %v363, %v362
    %v413 = vpack.c.b16 %v365, %v364
    %462 = vmatprep.subr.bf16.mxu0 0
    %463 = vmatpush1.bf16.msra.mxu0 %v366
    %464 = vmatprep.subr.bf16.mxu0 0
    %465 = vmatpush1.bf16.msra.mxu0 %v367
    %466 = vmatprep.subr.bf16.mxu0 0
    %467 = vmatpush1.bf16.msra.mxu0 %v368
    %468 = vmatprep.subr.bf16.mxu0 0
    %469 = vmatpush1.bf16.msra.mxu0 %v369
    %470 = vmatprep.subr.bf16.mxu0 0
    %471 = vmatpush1.bf16.msra.mxu0 %v370
    %472 = vmatprep.subr.bf16.mxu0 0
    %473 = vmatpush1.bf16.msra.mxu0 %v371
    %474 = vmatprep.subr.bf16.mxu0 0
    %475 = vmatpush1.bf16.msra.mxu0 %v372
    %476 = vmatprep.subr.bf16.mxu0 0
    %477 = vmatpush1.bf16.msra.mxu0 %v373
    %478 = vmatprep.subr.bf16.mxu0 0
    %479 = vmatpush1.bf16.msra.mxu0 %v374
    %480 = vmatprep.subr.bf16.mxu0 0
    %481 = vmatpush1.bf16.msra.mxu0 %v375
    %482 = vmatprep.subr.bf16.mxu0 0
    %483 = vmatpush1.bf16.msra.mxu0 %v376
    %484 = vmatprep.subr.bf16.mxu0 0
    %485 = vmatpush1.bf16.msra.mxu0 %v377
    %486 = vmatprep.subr.bf16.mxu0 0
    %487 = vmatpush1.bf16.msra.mxu0 %v378
    %488 = vmatprep.subr.bf16.mxu0 0
    %489 = vmatpush1.bf16.msra.mxu0 %v379
    %490 = vmatprep.subr.bf16.mxu0 0
    %491 = vmatpush1.bf16.msra.mxu0 %v380
    %492 = vmatprep.subr.bf16.mxu0 0
    %493 = vmatpush1.bf16.msra.mxu0 %v381
    %494 = vmatprep.mubr.bf16.mxu0 %v167
    %495 = vmatmul.mubr.bf16.gmra.mrb[0].mxu0 %v166
    %v496 = vpop.f32.mrb[0].mxu0
    %v497 = vadd.f32 0.0, %v496
    %v498 = vpop.f32.mrb[0].mxu0
    %v499 = vpop.f32.mrb[0].mxu0
    %v500 = vadd.f32 0.0, %v499
    %v501 = vpop.f32.mrb[0].mxu0
    %502 = vdwg.mxu0
    %503 = vmatprep.subr.bf16.mxu0 0
    %504 = vmatpush1.bf16.msra.mxu0 %v382
    %505 = vmatprep.subr.bf16.mxu0 0
    %506 = vmatpush1.bf16.msra.mxu0 %v383
    %507 = vmatprep.subr.bf16.mxu0 0
    %508 = vmatpush1.bf16.msra.mxu0 %v384
    %509 = vmatprep.subr.bf16.mxu0 0
    %510 = vmatpush1.bf16.msra.mxu0 %v385
    %511 = vmatprep.subr.bf16.mxu0 0
    %512 = vmatpush1.bf16.msra.mxu0 %v386
    %513 = vmatprep.subr.bf16.mxu0 0
    %514 = vmatpush1.bf16.msra.mxu0 %v387
    %515 = vmatprep.subr.bf16.mxu0 0
    %516 = vmatpush1.bf16.msra.mxu0 %v388
    %517 = vmatprep.subr.bf16.mxu0 0
    %518 = vmatpush1.bf16.msra.mxu0 %v389
    %519 = vmatprep.subr.bf16.mxu0 0
    %520 = vmatpush1.bf16.msra.mxu0 %v390
    %521 = vmatprep.subr.bf16.mxu0 0
    %522 = vmatpush1.bf16.msra.mxu0 %v391
    %523 = vmatprep.subr.bf16.mxu0 0
    %524 = vmatpush1.bf16.msra.mxu0 %v392
    %525 = vmatprep.subr.bf16.mxu0 0
    %526 = vmatpush1.bf16.msra.mxu0 %v393
    %527 = vmatprep.subr.bf16.mxu0 0
    %528 = vmatpush1.bf16.msra.mxu0 %v394
    %529 = vmatprep.subr.bf16.mxu0 0
    %530 = vmatpush1.bf16.msra.mxu0 %v395
    %531 = vmatprep.subr.bf16.mxu0 0
    %532 = vmatpush1.bf16.msra.mxu0 %v396
    %533 = vmatprep.subr.bf16.mxu0 0
    %534 = vmatpush1.bf16.msra.mxu0 %v397
    %535 = vmatprep.mubr.bf16.mxu0 %v169
    %536 = vmatmul.mubr.bf16.gmra.mrb[0].mxu0 %v168
    %v537 = vpop.f32.mrb[0].mxu0
    %v538 = vadd.f32 %v497, %v537
    %v539 = vpop.f32.mrb[0].mxu0
    %v540 = vpop.f32.mrb[0].mxu0
    %v541 = vadd.f32 %v500, %v540
    %v542 = vpop.f32.mrb[0].mxu0
    %543 = vdwg.mxu0
    %544 = vmatprep.subr.bf16.mxu0 0
    %545 = vmatpush1.bf16.msra.mxu0 %v398
    %546 = vmatprep.subr.bf16.mxu0 0
    %547 = vmatpush1.bf16.msra.mxu0 %v399
    %548 = vmatprep.subr.bf16.mxu0 0
    %549 = vmatpush1.bf16.msra.mxu0 %v400
    %550 = vmatprep.subr.bf16.mxu0 0
    %551 = vmatpush1.bf16.msra.mxu0 %v401
    %552 = vmatprep.subr.bf16.mxu0 0
    %553 = vmatpush1.bf16.msra.mxu0 %v402
    %554 = vmatprep.subr.bf16.mxu0 0
    %555 = vmatpush1.bf16.msra.mxu0 %v403
    %556 = vmatprep.subr.bf16.mxu0 0
    %557 = vmatpush1.bf16.msra.mxu0 %v404
    %558 = vmatprep.subr.bf16.mxu0 0
    %559 = vmatpush1.bf16.msra.mxu0 %v405
    %560 = vmatprep.subr.bf16.mxu0 0
    %561 = vmatpush1.bf16.msra.mxu0 %v406
    %562 = vmatprep.subr.bf16.mxu0 0
    %563 = vmatpush1.bf16.msra.mxu0 %v407
    %564 = vmatprep.subr.bf16.mxu0 0
    %565 = vmatpush1.bf16.msra.mxu0 %v408
    %566 = vmatprep.subr.bf16.mxu0 0
    %567 = vmatpush1.bf16.msra.mxu0 %v409
    %568 = vmatprep.subr.bf16.mxu0 0
    %569 = vmatpush1.bf16.msra.mxu0 %v410
    %570 = vmatprep.subr.bf16.mxu0 0
    %571 = vmatpush1.bf16.msra.mxu0 %v411
    %572 = vmatprep.subr.bf16.mxu0 0
    %573 = vmatpush1.bf16.msra.mxu0 %v412
    %574 = vmatprep.subr.bf16.mxu0 0
    %575 = vmatpush1.bf16.msra.mxu0 %v413
    %576 = vmatprep.mubr.bf16.mxu0 %v171
    %577 = vmatmul.mubr.bf16.gmra.mrb[0].mxu0 %v170
    %v578 = vpop.f32.mrb[0].mxu0
    %v579 = vadd.f32 %v538, %v578
    %v580 = vpop.f32.mrb[0].mxu0
    %v581 = vpop.f32.mrb[0].mxu0
    %v582 = vadd.f32 %v541, %v581
    %v583 = vpop.f32.mrb[0].mxu0
    %584 = vdwg.mxu0
    %v585 = vadd.f32 %v172, %v579
    %v586 = vadd.f32 %v173, %v582
    %587 = vst [vmem:[#allocation2] sm:$0xff] %v585
    %588 = vst [vmem:[#allocation2 + $0x8] sm:$0xff] %v586
    // Predicated region
    $region30: #{tpu_custom_call.1} parent=1 // pred_check
      %p589 = pneg %p47
    $region31: #{tpu_custom_call.1} parent=1 // pred_check_branch
      %591 = sbr.rel (%p589) target = $region33
    $region32: #{tpu_custom_call.1} parent=1 // pred_region
      %v592 = vld [vmem:[#allocation2] sm:$0xff]
      %v593 = vld [vmem:[#allocation2 + $0x8] sm:$0xff]
      %v594 = vld [vmem:[%s2] sm:$0x1]
      %v596 = vlaneseq
      %v597 = vshrl.u32 %v596, 7
      %v598 = vsub.s32 0, %v597
      %v599 = vrot.slane %v594, %v598
      %v601 = vadd.f32 %v592, %v599
      %v602 = vadd.f32 %v593, %v599
      %v603 = vmul.f32 %v601, %v601
      %v604 = vmul.f32 %v602, %v602
      %605 = vadd.xlane.f32.xlu0 %v603
      %v606 = vpop.xlane.xlu0 %605
      %607 = vadd.xlane.f32.xlu0 %v604
      %v608 = vpop.xlane.xlu0 %607
      %v609 = vmax.f32 %v606, 1e-12
      %v610 = vmax.f32 %v608, 1e-12
      %v611 = vrsqrt.pop %v609
      %v612 = vrsqrt.pop %v610
      %v613 = vmul.f32 %v601, %v611
      %v614 = vmul.f32 %v602, %v612
      %v615 = vld [vmem:[%s3] sm:$0x1]
      %v617 = vlaneseq
      %v618 = vshrl.u32 %v617, 7
      %v619 = vsub.s32 0, %v618
      %v620 = vrot.slane %v615, %v619
      %v622 = vmul.f32 %v613, %v620
      %v623 = vmul.f32 %v614, %v620
      %624 = vadd.xlane.f32.xlu0 %v622
      %v625 = vpop.xlane.xlu0 %624
      %626 = vadd.xlane.f32.xlu0 %v623
      %v627 = vpop.xlane.xlu0 %626
      %v628 = vsub.f32 0.0, %v625
      %v629 = vsub.f32 0.0, %v627
      %v630 = vmul.f32 %v628, 1.442695
      %v631 = vpow.pop %v630
      %v632 = vmul.f32 %v629, 1.442695
      %v633 = vpow.pop %v632
      %v634 = vadd.f32 %v631, 1.0
      %v635 = vadd.f32 %v633, 1.0
      %v636 = vrcp.pop %v634
      %v637 = vmul.f32 1.0, %v636
      %v638 = vrcp.pop %v635
      %v639 = vmul.f32 1.0, %v638
      %640 = vst [vmem:[#allocation8] sm:$0xff] %v637
      %641 = vst [vmem:[#allocation8 + $0x8] sm:$0xff] %v639
    $region33: #{tpu_custom_call.1} parent=1 // pred_fallthru
      _
    // Predicated region
    $region34: #{tpu_custom_call.1} parent=1 // pred_check
      _
    $region35: #{tpu_custom_call.1} parent=1 // pred_check_branch
      %643 = sbr.rel (0) target = $region37
    $region36: #{tpu_custom_call.1} parent=1 // pred_region
      %s645 = ssub.s32 256, 256
      %646 = vsyncadd [#allocation5], %s645
      %s647 = sshll.u32 [#allocation8], 4
      %s648 = int_to_ptr.vmem [resolvable:$true] %s647
      %653 = dma.vmem_to_hbm [thread:$0]  %s648, 256, %s4, [#allocation5], 128, 128, 8
    $region37: #{tpu_custom_call.1} parent=1 // pred_fallthru
      _
    // Predicated region
    $region38: #{tpu_custom_call.1} parent=1 // pred_check
      _
    $region39: #{tpu_custom_call.1} parent=1 // pred_check_branch
      %655 = sbr.rel (0) target = $region41
    $region40: #{tpu_custom_call.1} parent=1 // pred_region
      %656 = dma.done [#allocation5], 256
    $region41: #{tpu_custom_call.1} parent=1 // pred_fallthru
      _
    %657 = vsyncpa [#allocation4], 1
    %658 = vsyncpa [#allocation7], 1
    %659 = vsyncpa [#allocation5], 1

</llo_original>
